<compile_context>
chip_gen: v7x
topology: tpu7x:2x2x1
jax: 0.10.0
libtpu: 0.0.40
codegen_flags: <defaults>
</compile_context>

<pallas_src>
import functools

import jax
import jax.numpy as jnp
from jax.experimental import pallas as pl
from jax.experimental.pallas import tpu as pltpu

EPS = 1e-6  # LayerNorm eps in the reference module


def _round_up(v, m):
    return ((v + m - 1) // m) * m


def _bf16_eup_supported():
    """bf16 VPU/EUP exists on v6e/v7x; v5e and older have f32-only EUP."""
    try:
        kind = jax.devices()[0].device_kind.lower()
    except Exception:
        return False
    return not any(t in kind for t in ("v2", "v3", "v4", "v5"))


# ----------------------------- kernel helpers ------------------------------

def _normalize(v):
    """(v - mean) / (std + eps), unbiased std, matching the PyTorch LN.

    One-pass stats: sum and sum-of-squares are two independent XLU reductions
    (no mean->center->reduce dependency chain).  The reciprocal of (std + eps)
    is a per-row (tile, 1) EXACT divide -- essentially free, and removes the
    ~1e-3 relative error the approx reciprocal put on every output element.
    """
    n = v.shape[-1]
    s1 = jnp.sum(v, axis=-1, keepdims=True)
    s2 = jnp.sum(v * v, axis=-1, keepdims=True)
    mean = s1 * (1.0 / n)
    var = jnp.maximum(s2 - s1 * mean, 0.0) * (1.0 / (n - 1))
    inv = 1.0 / (jnp.sqrt(var) + EPS)        # exact, per-row
    return (v - mean) * inv


def _mish(v, exp_dtype):
    """x * tanh(softplus(x)) = x * (t-1)/(t+1), t = (1+e^x)^2.

    With u = t - 1 = e*(2+e) there is no cancellation for very negative x, so
    the exp may run in bf16 (v6e/v7x EUP) without precision blow-up.  One exp
    (in exp_dtype) + one f32 approx EUP reciprocal per element.
    """
    e = jnp.exp(jnp.minimum(v, 40.0).astype(exp_dtype)).astype(jnp.float32)
    u = e * (2.0 + e)
    return v * u * pl.reciprocal(u + 2.0, approx=True)


def node_embedding_kernel(x_ref, w0_ref, w1_ref, vec_ref, out_ref, *, exp_dtype):
    x = x_ref[...].astype(jnp.float32)
    vecs = vec_ref[...]                        # (4, H) f32
    b0, b1, lnf_a, lnf_b = vecs[0:1], vecs[1:2], vecs[2:3], vecs[3:4]

    # Layer 0: LayerNorm (affine folded into w0/b0) -> Dropout(identity, eval)
    #          -> Linear (bf16 MXU operands, f32 accumulate) -> Mish
    # TODO(synk): training-mode dropout RNG masking (pltpu.prng_random_bits)
    # is not implemented; eval mode is the identity.
    h = _normalize(x)
    h = jnp.dot(h.astype(jnp.bfloat16), w0_ref[...],
                preferred_element_type=jnp.float32) + b0
    h = _mish(h, exp_dtype)

    # Layer 1: LayerNorm (affine folded into w1/b1) -> Linear -> Mish
    h = _normalize(h)
    h = jnp.dot(h.astype(jnp.bfloat16), w1_ref[...],
                preferred_element_type=jnp.float32) + b1
    h = _mish(h, exp_dtype)

    # Final LayerNorm keeps its own affine (no linear follows it).
    h = lnf_a * _normalize(h) + lnf_b

    # Lane-dense when H is a multiple of 128 (the realistic config below);
    # H < 128 falls back to a masked store (column padding would change the
    # LayerNorm statistics over the hidden dim, so it is not applied here).
    out_ref[...] = h.astype(out_ref.dtype)


# ------------------------------ host wrapper -------------------------------

def _choose_row_tile(rows, requested):
    """Row tile: multiple of 8, as large as requested.  Never shrink to
    manufacture extra grid steps (512+-row tiles sit at ~85% of the HBM
    roofline vs ~63% at 256).  If everything fits in one tile but there is
    enough work for two >=256-row blocks, split once so v7x's second
    TensorCore gets a block (the grid axis is marked "parallel")."""
    rows8 = _round_up(rows, 8)
    tile = min(_round_up(requested, 8), rows8)
    if tile == rows8 and rows8 >= 512:
        tile = _round_up(pl.cdiv(rows8, 2), 8)
    return tile


def node_embedding(x, params, *, row_tile=512, mish_bf16=None):
    """x: [B, N, F_in] -> [B, N, H].  Output dtype follows x.dtype (pass bf16
    x for bf16 HBM I/O; compute is f32/bf16-MXU internally either way)."""
    B, N, F_in = x.shape
    H = params["w0"].shape[1]
    rows = B * N

    tile = _choose_row_tile(rows, row_tile)
    grid = pl.cdiv(rows, tile)          # partial last block is masked by Pallas

    if mish_bf16 is None:
        mish_bf16 = _bf16_eup_supported()
    exp_dtype = jnp.bfloat16 if mish_bf16 else jnp.float32

    x2 = x.reshape(rows, F_in)

    # Fold the LayerNorm affines of layers 0 and 1 into the Linear params
    # (one-time host-side precompute, in f32):  LN(x) @ W + b
    #   = ((x-m)/(s+eps)) @ (diag(gamma) @ W) + (beta @ W + b)
    # Weights are then pre-cast to bf16 for the MXU.
    w0 = (params["ln0_a"].reshape(F_in, 1) * params["w0"]).astype(jnp.bfloat16)
    b0 = params["ln0_b"].reshape(1, F_in) @ params["w0"] + params["b0"].reshape(1, H)
    w1 = (params["ln1_a"].reshape(H, 1) * params["w1"]).astype(jnp.bfloat16)
    b1 = params["ln1_b"].reshape(1, H) @ params["w1"] + params["b1"].reshape(1, H)
    vecs = jnp.concatenate(
        [b0, b1, params["lnf_a"].reshape(1, H), params["lnf_b"].reshape(1, H)],
        axis=0).astype(jnp.float32)                       # (4, H) packed operand

    full = lambda i: (0, 0)          # parameters: same full block every step
    rowmap = lambda i: (i, 0)        # activations: tiled along rows

    out2 = pl.pallas_call(
        functools.partial(node_embedding_kernel, exp_dtype=exp_dtype),
        out_shape=jax.ShapeDtypeStruct((rows, H), x.dtype),
        grid_spec=pltpu.PrefetchScalarGridSpec(
            num_scalar_prefetch=0,
            grid=(grid,),
            in_specs=[
                pl.BlockSpec((tile, F_in), rowmap),   # x rows
                pl.BlockSpec((F_in, H), full),        # w0 (LN0 affine folded, bf16)
                pl.BlockSpec((H, H), full),           # w1 (LN1 affine folded, bf16)
                pl.BlockSpec((4, H), full),           # packed b0, b1, lnf_a, lnf_b
            ],
            out_specs=pl.BlockSpec((tile, H), rowmap),
        ),
        compiler_params=pltpu.CompilerParams(
            dimension_semantics=("parallel",)),
    )(x2, w0, w1, vecs)

    return out2.reshape(B, N, H)


# --------------------------- pure-JAX reference ----------------------------

def _layer_norm_ref(v, a, b):
    n = v.shape[-1]
    mean = jnp.mean(v, axis=-1, keepdims=True)
    var = jnp.sum((v - mean) ** 2, axis=-1, keepdims=True) / (n - 1)
    std = jnp.sqrt(var)
    return a * (v - mean) / (std + EPS) + b


def _mish_ref(v):
    sp = jnp.log1p(jnp.exp(-jnp.abs(v))) + jnp.maximum(v, 0.0)
    return v * jnp.tanh(sp)


def node_embedding_ref(x, params):
    B, N, F_in = x.shape
    h = x.reshape(B * N, F_in).astype(jnp.float32)
    h = _layer_norm_ref(h, params["ln0_a"], params["ln0_b"])
    h = _mish_ref(h @ params["w0"] + params["b0"])
    h = _layer_norm_ref(h, params["ln1_a"], params["ln1_b"])
    h = _mish_ref(h @ params["w1"] + params["b1"])
    h = _layer_norm_ref(h, params["lnf_a"], params["lnf_b"])
    return h.reshape(B, N, -1).astype(x.dtype)


def init_params(key, in_features, hidden_features):
    ks = jax.random.split(key, 10)
    lim0 = 1.0 / jnp.sqrt(in_features)
    lim1 = 1.0 / jnp.sqrt(hidden_features)
    u = lambda k, shape, lim: jax.random.uniform(k, shape, jnp.float32, -lim, lim)
    # LayerNorm affines: PyTorch default init is ones/zeros; perturb them so the
    # host-side affine folding is actually exercised by the correctness check.
    g = lambda k, shape: 0.1 * jax.random.normal(k, shape, jnp.float32)
    return {
        "ln0_a": 1.0 + g(ks[0], (1, in_features)),
        "ln0_b": g(ks[1], (1, in_features)),
        "w0": u(ks[2], (in_features, hidden_features), lim0),
        "b0": u(ks[3], (1, hidden_features), lim0),
        "ln1_a": 1.0 + g(ks[4], (1, hidden_features)),
        "ln1_b": g(ks[5], (1, hidden_features)),
        "w1": u(ks[6], (hidden_features, hidden_features), lim1),
        "b1": u(ks[7], (1, hidden_features), lim1),
        "lnf_a": 1.0 + g(ks[8], (1, hidden_features)),
        "lnf_b": g(ks[9], (1, hidden_features)),
    }


if __name__ == "__main__":
    key = jax.random.PRNGKey(0)
    # Tolerance covers bf16 MXU operands, bf16 exp on v6e/v7x, and the approx
    # EUP reciprocal inside Mish (LayerNorm reciprocals are now exact).
    ATOL = RTOL = 3e-2

    # Case 1: original small config (in=32, hid=64, 16 rows -> single tile).
    kx, kp, key = jax.random.split(key, 3)
    B, N, IN_F, HID = 2, 8, 32, 64
    x = jax.random.normal(kx, (B, N, IN_F), jnp.float32)
    params = init_params(kp, IN_F, HID)
    out = jax.block_until_ready(node_embedding(x, params))
    ref = node_embedding_ref(x, params)
    assert out.shape == (B, N, HID)
    assert jnp.allclose(out, ref, atol=ATOL, rtol=RTOL), "case 1 mismatch vs reference"

    # Case 2: lane-dense hidden width (128), rows=2000 not a multiple of the
    # tile -> exercises the masked boundary block of a multi-step parallel grid
    # (tile=512, grid=4) with no host-side pad/slice passes.
    kx, kp, key = jax.random.split(key, 3)
    B, N, IN_F, HID = 2, 1000, 64, 128
    x = jax.random.normal(kx, (B, N, IN_F), jnp.float32)
    params = init_params(kp, IN_F, HID)
    out = jax.block_until_ready(node_embedding(x, params))
    ref = node_embedding_ref(x, params)
    assert out.shape == (B, N, HID)
    assert jnp.allclose(out, ref, atol=ATOL, rtol=RTOL), "case 2 mismatch vs reference"

    print("KERNEL_OK")
</pallas_src>

<mosaic_0001>
module attributes {stable_mosaic.version = 11 : i64} {
  func.func @node_embedding_kernel(%arg0: i32, %arg1: memref<16x32xf32, #tpu.memory_space<vmem>>, %arg2: memref<32x64xbf16, #tpu.memory_space<vmem>>, %arg3: memref<64x64xbf16, #tpu.memory_space<vmem>>, %arg4: memref<4x64xf32, #tpu.memory_space<vmem>>, %arg5: memref<16x64xf32, #tpu.memory_space<vmem>>) attributes {dimension_semantics = [#tpu.dimension_semantics<parallel>], iteration_bounds = array<i64: 1>, scalar_prefetch = 0 : i64, scratch_operands = 0 : i64, tpu.core_type = #tpu.core_type<tc>, window_params = [{transform_indices = @transform_0, window_bounds = array<i64: 16, 32>}, {pipeline_mode = #tpu.pipeline_mode<synchronous>, transform_indices = @transform_1, window_bounds = array<i64: 32, 64>}, {pipeline_mode = #tpu.pipeline_mode<synchronous>, transform_indices = @transform_2, window_bounds = array<i64: 64, 64>}, {pipeline_mode = #tpu.pipeline_mode<synchronous>, transform_indices = @transform_3, window_bounds = array<i64: 4, 64>}, {transform_indices = @transform_4, window_bounds = array<i64: 16, 64>}]} {
    %c0 = arith.constant 0 : index
    %c0_0 = arith.constant 0 : index
    %0 = vector.load %arg1[%c0, %c0_0] : memref<16x32xf32, #tpu.memory_space<vmem>>, vector<16x32xf32>
    %c0_1 = arith.constant 0 : index
    %c0_2 = arith.constant 0 : index
    %1 = vector.load %arg4[%c0_1, %c0_2] : memref<4x64xf32, #tpu.memory_space<vmem>>, vector<4x64xf32>
    %2 = vector.extract_strided_slice %1 {offsets = [0, 0], sizes = [1, 64], strides = [1, 1]} : vector<4x64xf32> to vector<1x64xf32>
    %3 = vector.extract_strided_slice %1 {offsets = [1, 0], sizes = [1, 64], strides = [1, 1]} : vector<4x64xf32> to vector<1x64xf32>
    %4 = vector.extract_strided_slice %1 {offsets = [2, 0], sizes = [1, 64], strides = [1, 1]} : vector<4x64xf32> to vector<1x64xf32>
    %5 = vector.extract_strided_slice %1 {offsets = [3, 0], sizes = [1, 64], strides = [1, 1]} : vector<4x64xf32> to vector<1x64xf32>
    %cst = arith.constant dense<0.000000e+00> : vector<16xf32>
    %6 = vector.multi_reduction <add>, %0, %cst [1] : vector<16x32xf32> to vector<16xf32>
    %7 = vector.shape_cast %6 : vector<16xf32> to vector<16x1xf32>
    %8 = arith.mulf %0, %0 : vector<16x32xf32>
    %cst_3 = arith.constant dense<0.000000e+00> : vector<16xf32>
    %9 = vector.multi_reduction <add>, %8, %cst_3 [1] : vector<16x32xf32> to vector<16xf32>
    %10 = vector.shape_cast %9 : vector<16xf32> to vector<16x1xf32>
    %cst_4 = arith.constant 3.125000e-02 : f32
    %11 = vector.broadcast %cst_4 : f32 to vector<16x1xf32>
    %12 = arith.mulf %7, %11 : vector<16x1xf32>
    %13 = arith.mulf %7, %12 : vector<16x1xf32>
    %14 = arith.subf %10, %13 : vector<16x1xf32>
    %cst_5 = arith.constant 0.000000e+00 : f32
    %15 = vector.broadcast %cst_5 : f32 to vector<16x1xf32>
    %16 = arith.maximumf %14, %15 : vector<16x1xf32>
    %cst_6 = arith.constant 0.0322580636 : f32
    %17 = vector.broadcast %cst_6 : f32 to vector<16x1xf32>
    %18 = arith.mulf %16, %17 : vector<16x1xf32>
    %19 = math.sqrt %18 : vector<16x1xf32>
    %cst_7 = arith.constant 9.99999997E-7 : f32
    %20 = vector.broadcast %cst_7 : f32 to vector<16x1xf32>
    %21 = arith.addf %19, %20 : vector<16x1xf32>
    %cst_8 = arith.constant 1.000000e+00 : f32
    %22 = vector.broadcast %cst_8 : f32 to vector<16x1xf32>
    %23 = arith.divf %22, %21 : vector<16x1xf32>
    %24 = vector.broadcast %12 : vector<16x1xf32> to vector<16x32xf32>
    %25 = arith.subf %0, %24 : vector<16x32xf32>
    %26 = vector.broadcast %23 : vector<16x1xf32> to vector<16x32xf32>
    %27 = arith.mulf %25, %26 : vector<16x32xf32>
    %28 = arith.truncf %27 : vector<16x32xf32> to vector<16x32xbf16>
    %c0_9 = arith.constant 0 : index
    %c0_10 = arith.constant 0 : index
    %29 = vector.load %arg2[%c0_9, %c0_10] : memref<32x64xbf16, #tpu.memory_space<vmem>>, vector<32x64xbf16>
    %cst_11 = arith.constant dense<0.000000e+00> : vector<16x64xf32>
    %30 = tpu.matmul %28, %29, %cst_11 {dimension_numbers = #tpu.dot_dimension_numbers<[1], [0], [0], [1], [0, 0, 1, 1], [], []>} : vector<16x32xbf16>, vector<32x64xbf16>, vector<16x64xf32> -> vector<16x64xf32>
    %31 = vector.broadcast %2 : vector<1x64xf32> to vector<16x64xf32>
    %32 = arith.addf %30, %31 : vector<16x64xf32>
    %cst_12 = arith.constant 4.000000e+01 : f32
    %33 = vector.broadcast %cst_12 : f32 to vector<16x64xf32>
    %34 = arith.minimumf %32, %33 : vector<16x64xf32>
    %35 = arith.truncf %34 : vector<16x64xf32> to vector<16x64xbf16>
    %36 = math.exp %35 : vector<16x64xbf16>
    %37 = arith.extf %36 : vector<16x64xbf16> to vector<16x64xf32>
    %cst_13 = arith.constant 2.000000e+00 : f32
    %38 = vector.broadcast %cst_13 : f32 to vector<16x64xf32>
    %39 = arith.addf %38, %37 : vector<16x64xf32>
    %40 = arith.mulf %37, %39 : vector<16x64xf32>
    %41 = arith.mulf %32, %40 : vector<16x64xf32>
    %cst_14 = arith.constant 2.000000e+00 : f32
    %42 = vector.broadcast %cst_14 : f32 to vector<16x64xf32>
    %43 = arith.addf %40, %42 : vector<16x64xf32>
    %44 = tpu.reciprocal %43 {approx = true} : vector<16x64xf32> -> vector<16x64xf32>
    %45 = arith.mulf %41, %44 : vector<16x64xf32>
    %cst_15 = arith.constant dense<0.000000e+00> : vector<16xf32>
    %46 = vector.multi_reduction <add>, %45, %cst_15 [1] : vector<16x64xf32> to vector<16xf32>
    %47 = vector.shape_cast %46 : vector<16xf32> to vector<16x1xf32>
    %48 = arith.mulf %45, %45 : vector<16x64xf32>
    %cst_16 = arith.constant dense<0.000000e+00> : vector<16xf32>
    %49 = vector.multi_reduction <add>, %48, %cst_16 [1] : vector<16x64xf32> to vector<16xf32>
    %50 = vector.shape_cast %49 : vector<16xf32> to vector<16x1xf32>
    %cst_17 = arith.constant 1.562500e-02 : f32
    %51 = vector.broadcast %cst_17 : f32 to vector<16x1xf32>
    %52 = arith.mulf %47, %51 : vector<16x1xf32>
    %53 = arith.mulf %47, %52 : vector<16x1xf32>
    %54 = arith.subf %50, %53 : vector<16x1xf32>
    %cst_18 = arith.constant 0.000000e+00 : f32
    %55 = vector.broadcast %cst_18 : f32 to vector<16x1xf32>
    %56 = arith.maximumf %54, %55 : vector<16x1xf32>
    %cst_19 = arith.constant 0.0158730168 : f32
    %57 = vector.broadcast %cst_19 : f32 to vector<16x1xf32>
    %58 = arith.mulf %56, %57 : vector<16x1xf32>
    %59 = math.sqrt %58 : vector<16x1xf32>
    %cst_20 = arith.constant 9.99999997E-7 : f32
    %60 = vector.broadcast %cst_20 : f32 to vector<16x1xf32>
    %61 = arith.addf %59, %60 : vector<16x1xf32>
    %cst_21 = arith.constant 1.000000e+00 : f32
    %62 = vector.broadcast %cst_21 : f32 to vector<16x1xf32>
    %63 = arith.divf %62, %61 : vector<16x1xf32>
    %64 = vector.broadcast %52 : vector<16x1xf32> to vector<16x64xf32>
    %65 = arith.subf %45, %64 : vector<16x64xf32>
    %66 = vector.broadcast %63 : vector<16x1xf32> to vector<16x64xf32>
    %67 = arith.mulf %65, %66 : vector<16x64xf32>
    %68 = arith.truncf %67 : vector<16x64xf32> to vector<16x64xbf16>
    %c0_22 = arith.constant 0 : index
    %c0_23 = arith.constant 0 : index
    %69 = vector.load %arg3[%c0_22, %c0_23] : memref<64x64xbf16, #tpu.memory_space<vmem>>, vector<64x64xbf16>
    %cst_24 = arith.constant dense<0.000000e+00> : vector<16x64xf32>
    %70 = tpu.matmul %68, %69, %cst_24 {dimension_numbers = #tpu.dot_dimension_numbers<[1], [0], [0], [1], [0, 0, 1, 1], [], []>} : vector<16x64xbf16>, vector<64x64xbf16>, vector<16x64xf32> -> vector<16x64xf32>
    %71 = vector.broadcast %3 : vector<1x64xf32> to vector<16x64xf32>
    %72 = arith.addf %70, %71 : vector<16x64xf32>
    %cst_25 = arith.constant 4.000000e+01 : f32
    %73 = vector.broadcast %cst_25 : f32 to vector<16x64xf32>
    %74 = arith.minimumf %72, %73 : vector<16x64xf32>
    %75 = arith.truncf %74 : vector<16x64xf32> to vector<16x64xbf16>
    %76 = math.exp %75 : vector<16x64xbf16>
    %77 = arith.extf %76 : vector<16x64xbf16> to vector<16x64xf32>
    %cst_26 = arith.constant 2.000000e+00 : f32
    %78 = vector.broadcast %cst_26 : f32 to vector<16x64xf32>
    %79 = arith.addf %78, %77 : vector<16x64xf32>
    %80 = arith.mulf %77, %79 : vector<16x64xf32>
    %81 = arith.mulf %72, %80 : vector<16x64xf32>
    %cst_27 = arith.constant 2.000000e+00 : f32
    %82 = vector.broadcast %cst_27 : f32 to vector<16x64xf32>
    %83 = arith.addf %80, %82 : vector<16x64xf32>
    %84 = tpu.reciprocal %83 {approx = true} : vector<16x64xf32> -> vector<16x64xf32>
    %85 = arith.mulf %81, %84 : vector<16x64xf32>
    %cst_28 = arith.constant dense<0.000000e+00> : vector<16xf32>
    %86 = vector.multi_reduction <add>, %85, %cst_28 [1] : vector<16x64xf32> to vector<16xf32>
    %87 = vector.shape_cast %86 : vector<16xf32> to vector<16x1xf32>
    %88 = arith.mulf %85, %85 : vector<16x64xf32>
    %cst_29 = arith.constant dense<0.000000e+00> : vector<16xf32>
    %89 = vector.multi_reduction <add>, %88, %cst_29 [1] : vector<16x64xf32> to vector<16xf32>
    %90 = vector.shape_cast %89 : vector<16xf32> to vector<16x1xf32>
    %cst_30 = arith.constant 1.562500e-02 : f32
    %91 = vector.broadcast %cst_30 : f32 to vector<16x1xf32>
    %92 = arith.mulf %87, %91 : vector<16x1xf32>
    %93 = arith.mulf %87, %92 : vector<16x1xf32>
    %94 = arith.subf %90, %93 : vector<16x1xf32>
    %cst_31 = arith.constant 0.000000e+00 : f32
    %95 = vector.broadcast %cst_31 : f32 to vector<16x1xf32>
    %96 = arith.maximumf %94, %95 : vector<16x1xf32>
    %cst_32 = arith.constant 0.0158730168 : f32
    %97 = vector.broadcast %cst_32 : f32 to vector<16x1xf32>
    %98 = arith.mulf %96, %97 : vector<16x1xf32>
    %99 = math.sqrt %98 : vector<16x1xf32>
    %cst_33 = arith.constant 9.99999997E-7 : f32
    %100 = vector.broadcast %cst_33 : f32 to vector<16x1xf32>
    %101 = arith.addf %99, %100 : vector<16x1xf32>
    %cst_34 = arith.constant 1.000000e+00 : f32
    %102 = vector.broadcast %cst_34 : f32 to vector<16x1xf32>
    %103 = arith.divf %102, %101 : vector<16x1xf32>
    %104 = vector.broadcast %92 : vector<16x1xf32> to vector<16x64xf32>
    %105 = arith.subf %85, %104 : vector<16x64xf32>
    %106 = vector.broadcast %103 : vector<16x1xf32> to vector<16x64xf32>
    %107 = arith.mulf %105, %106 : vector<16x64xf32>
    %108 = vector.broadcast %4 : vector<1x64xf32> to vector<16x64xf32>
    %109 = arith.mulf %108, %107 : vector<16x64xf32>
    %110 = vector.broadcast %5 : vector<1x64xf32> to vector<16x64xf32>
    %111 = arith.addf %109, %110 : vector<16x64xf32>
    %c0_35 = arith.constant 0 : index
    %c0_36 = arith.constant 0 : index
    %112 = vector.load %arg5[%c0_35, %c0_36] : memref<16x64xf32, #tpu.memory_space<vmem>>, vector<16x64xf32>
    tpu.vector_store %arg5[%c0_35, %c0_36], %111 {strides = array<i32>} : memref<16x64xf32, #tpu.memory_space<vmem>>, vector<16x64xf32>,
    return
  }
  func.func @transform_0(%arg0: i32) -> (i32, i32) {
    %c0_i32 = arith.constant 0 : i32
    %c0_i32_0 = arith.constant 0 : i32
    return %arg0, %c0_i32 : i32, i32
  }
  func.func @transform_1(%arg0: i32) -> (i32, i32) {
    %c0_i32 = arith.constant 0 : i32
    %c0_i32_0 = arith.constant 0 : i32
    %c0_i32_1 = arith.constant 0 : i32
    return %c0_i32, %c0_i32_0 : i32, i32
  }
  func.func @transform_2(%arg0: i32) -> (i32, i32) {
    %c0_i32 = arith.constant 0 : i32
    %c0_i32_0 = arith.constant 0 : i32
    %c0_i32_1 = arith.constant 0 : i32
    return %c0_i32, %c0_i32_0 : i32, i32
  }
  func.func @transform_3(%arg0: i32) -> (i32, i32) {
    %c0_i32 = arith.constant 0 : i32
    %c0_i32_0 = arith.constant 0 : i32
    %c0_i32_1 = arith.constant 0 : i32
    return %c0_i32, %c0_i32_0 : i32, i32
  }
  func.func @transform_4(%arg0: i32) -> (i32, i32) {
    %c0_i32 = arith.constant 0 : i32
    %c0_i32_0 = arith.constant 0 : i32
    return %arg0, %c0_i32 : i32, i32
  }
}

</mosaic_0001>

<llo_original>
// kernel: tpu_custom_call.1
$region0: #{tpu_custom_call.1}
  #allocation0 [shape = 'u32[]', space=smem, size = 0x4, offset = 0x4, fixed_abs, tag = 'smem constant byte address 0x4 - core index']
  #allocation1 [shape = 'u32[144,128]{1,0:T(1,128)}', space=vmem, size = 0x12000, scoped, tag = 'internal scratch']
  %s0 = inlined_call_operand.hbm [shape: f32[16,32], index: 0, kind: input, shape index: {}]
  %s1 = inlined_call_operand.hbm [shape: bf16[32,64], index: 1, kind: input, shape index: {}]
  %s2 = inlined_call_operand.hbm [shape: bf16[64,64], index: 2, kind: input, shape index: {}]
  %s3 = inlined_call_operand.vmem [shape: f32[4,64], index: 3, kind: input, shape index: {}]
  %s4 = inlined_call_operand.hbm [shape: f32[16,64], index: 4, kind: output, shape index: {}]
  %s5 = sld [smem:[#allocation0]]
  $region38: #{tpu_custom_call.1} parent=0
    _
  %s7 = ssub.s32 1, %s5
  %s8 = scalar_select 0, %s7, %s5
  $region1: #{tpu_custom_call.1} parent=0
    #allocation2 [shape = 'u8[8192]{0}', space=vmem, size = 0x2000, scoped, tag = 'input window, operand 0, single buffered']
    #allocation3 [shape = 's32[1]{0}', space=sflag, size = 0x4, scoped, tag = 'scoped memory for tpu_custom_call.1']
    #allocation4 [shape = 's32[1]{0}', space=sflag, size = 0x4, scoped, tag = 'scoped memory for tpu_custom_call.1']
    #allocation5 [shape = 'u8[8192]{0}', space=vmem, size = 0x2000, scoped, tag = 'input window, operand 1, single buffered']
    #allocation6 [shape = 's32[1]{0}', space=sflag, size = 0x4, scoped, tag = 'scoped memory for tpu_custom_call.1']
    #allocation7 [shape = 'u8[16384]{0}', space=vmem, size = 0x4000, scoped, tag = 'input window, operand 2, single buffered']
    #allocation8 [shape = 'u8[8192]{0}', space=vmem, size = 0x2000, scoped, tag = 'output window, operand 0, single buffered']
    %9 = vsyncpa [#allocation3], 0
    %10 = vsyncpa [#allocation6], 0
    %11 = vsyncpa [#allocation4], 0
    // Predicated region
    $region2: #{tpu_custom_call.1} parent=1 // pred_check
      _
    $region3: #{tpu_custom_call.1} parent=1 // pred_check_branch
      %13 = sbr.rel (0) target = $region5
    $region4: #{tpu_custom_call.1} parent=1 // pred_region
      %s15 = ssub.s32 256, 256
      %16 = vsyncadd [#allocation3], %s15
      %s17 = sshll.u32 [#allocation2], 4
      %s18 = int_to_ptr.vmem [resolvable:$true] %s17
      %23 = dma.hbm_to_vmem [thread:$0]  %s0, 256, %s18, [#allocation3], 128, 128, 8
    $region5: #{tpu_custom_call.1} parent=1 // pred_fallthru
      _
    // Predicated region
    $region6: #{tpu_custom_call.1} parent=1 // pred_check
      _
    $region7: #{tpu_custom_call.1} parent=1 // pred_check_branch
      %25 = sbr.rel (0) target = $region9
    $region8: #{tpu_custom_call.1} parent=1 // pred_region
      %s27 = ssub.s32 256, 256
      %28 = vsyncadd [#allocation6], %s27
      %s29 = sshll.u32 [#allocation5], 4
      %s30 = int_to_ptr.vmem [resolvable:$true] %s29
      %35 = dma.hbm_to_vmem [thread:$0]  %s1, 256, %s30, [#allocation6], 64, 64, 4
    $region9: #{tpu_custom_call.1} parent=1 // pred_fallthru
      _
    // Predicated region
    $region10: #{tpu_custom_call.1} parent=1 // pred_check
      _
    $region11: #{tpu_custom_call.1} parent=1 // pred_check_branch
      %37 = sbr.rel (0) target = $region13
    $region12: #{tpu_custom_call.1} parent=1 // pred_region
      %s39 = ssub.s32 512, 512
      %40 = vsyncadd [#allocation6], %s39
      %s41 = sshll.u32 [#allocation7], 4
      %s42 = int_to_ptr.vmem [resolvable:$true] %s41
      %47 = dma.hbm_to_vmem [thread:$0]  %s2, 512, %s42, [#allocation6], 64, 64, 4
    $region13: #{tpu_custom_call.1} parent=1 // pred_fallthru
      _
    // Predicated region
    $region14: #{tpu_custom_call.1} parent=1 // pred_check
      _
    $region15: #{tpu_custom_call.1} parent=1 // pred_check_branch
      %49 = sbr.rel (0) target = $region17
    $region16: #{tpu_custom_call.1} parent=1 // pred_region
      _
    $region17: #{tpu_custom_call.1} parent=1 // pred_fallthru
      _
    // Predicated region
    $region18: #{tpu_custom_call.1} parent=1 // pred_check
      _
    $region19: #{tpu_custom_call.1} parent=1 // pred_check_branch
      %51 = sbr.rel (0) target = $region21
    $region20: #{tpu_custom_call.1} parent=1 // pred_region
      %52 = dma.done [#allocation3], 256
    $region21: #{tpu_custom_call.1} parent=1 // pred_fallthru
      _
    // Predicated region
    $region22: #{tpu_custom_call.1} parent=1 // pred_check
      _
    $region23: #{tpu_custom_call.1} parent=1 // pred_check_branch
      %54 = sbr.rel (0) target = $region25
    $region24: #{tpu_custom_call.1} parent=1 // pred_region
      %55 = dma.done [#allocation6], 256
    $region25: #{tpu_custom_call.1} parent=1 // pred_fallthru
      _
    // Predicated region
    $region26: #{tpu_custom_call.1} parent=1 // pred_check
      _
    $region27: #{tpu_custom_call.1} parent=1 // pred_check_branch
      %57 = sbr.rel (0) target = $region29
    $region28: #{tpu_custom_call.1} parent=1 // pred_region
      %58 = dma.done [#allocation6], 512
    $region29: #{tpu_custom_call.1} parent=1 // pred_fallthru
      _
    %v60 = vld [vmem:[#allocation2] sm:$0xff]
    %v61 = vld [vmem:[#allocation2 + $0x8] sm:$0xff]
    %v62 = vld [vmem:[%s3] sm:$0xf]
    %vm63 = vcmask 261120
    %v64 = vsel %vm63, %v60, 0.0
    %65 = vadd.xlane.f32.xlu0 %v64
    %v66 = vpop.xlane.xlu0 %65
    %v67 = vsel %vm63, %v61, 0.0
    %68 = vadd.xlane.f32.xlu0 %v67
    %v69 = vpop.xlane.xlu0 %68
    %v70 = vmul.f32 %v60, %v60
    %v71 = vmul.f32 %v61, %v61
    %v72 = vsel %vm63, %v70, 0.0
    %73 = vadd.xlane.f32.xlu0 %v72
    %v74 = vpop.xlane.xlu0 %73
    %v75 = vsel %vm63, %v71, 0.0
    %76 = vadd.xlane.f32.xlu0 %v75
    %v77 = vpop.xlane.xlu0 %76
    %v78 = vmul.f32 %v66, 0.03125
    %v79 = vmul.f32 %v69, 0.03125
    %v80 = vmul.f32 %v66, %v78
    %v81 = vmul.f32 %v69, %v79
    %v82 = vsub.f32 %v74, %v80
    %v83 = vsub.f32 %v77, %v81
    %v84 = vmax.f32 %v82, 0.0
    %v85 = vmax.f32 %v83, 0.0
    %v86 = vmul.f32 %v84, 0.032258064
    %v87 = vmul.f32 %v85, 0.032258064
    %v88 = vrsqrt.pop %v86
    %v89 = vmul.f32 %v86, %v88
    %vm90 = vcmp.eq.f32.partialorder %v86, inf
    %v91 = vsel %vm90, %v86, %v89
    %vm92 = vcmp.eq.f32.partialorder %v86, 0.0
    %v93 = vand.u32 %v86, 2147483648
    %v94 = vsel %vm92, %v93, %v91
    %v95 = vrsqrt.pop %v87
    %v96 = vmul.f32 %v87, %v95
    %vm97 = vcmp.eq.f32.partialorder %v87, inf
    %v98 = vsel %vm97, %v87, %v96
    %vm99 = vcmp.eq.f32.partialorder %v87, 0.0
    %v100 = vand.u32 %v87, 2147483648
    %v101 = vsel %vm99, %v100, %v98
    %v102 = vadd.f32 %v94, 1e-06
    %v103 = vadd.f32 %v101, 1e-06
    %v104 = vrcp.pop %v102
    %v105 = vmul.f32 1.0, %v104
    %v106 = vrcp.pop %v103
    %v107 = vmul.f32 1.0, %v106
    %v108 = vsub.f32 %v60, %v78
    %v109 = vsub.f32 %v61, %v79
    %v110 = vmul.f32 %v108, %v105
    %v111 = vmul.f32 %v109, %v107
    %v112 = vpack.c.bf16 %v111, %v110
    %v113 = vld [vmem:[#allocation5] sm:$0xf]
    %v114 = vld [vmem:[#allocation5 + $0x4] sm:$0xf]
    %v115 = vld [vmem:[#allocation5 + $0x8] sm:$0xf]
    %v116 = vld [vmem:[#allocation5 + $0xc] sm:$0xf]
    %v117 = vlaneseq
    %v118 = vshrl.u32 %v117, 7
    %v119 = vsub.s32 0, %v118
    %v120 = vrot.slane %v62, %v119
    %v125 = vunpack.c.l.b16 %v113
    %v126 = vunpack.c.l.b16 %v114
    %v127 = vunpack.c.l.b16 %v115
    %v128 = vunpack.c.l.b16 %v116
    %v129 = vpack.c.b16 %v126, %v125
    %v130 = vpack.c.b16 %v128, %v127
    %v134 = vsel %vm63, %v112, 0
    %136 = vmatprep.subr.bf16.mxu0 0
    %137 = vmatpush1.bf16.msra.mxu0 %v129
    %138 = vmatprep.subr.bf16.mxu0 0
    %139 = vmatpush1.bf16.msra.mxu0 %v130
    %140 = vmatprep.subr.bf16.mxu0 0
    %141 = vmatpush1.bf16.msra.mxu0 0
    %142 = vmatprep.subr.bf16.mxu0 0
    %143 = vmatpush1.bf16.msra.mxu0 0
    %144 = vmatprep.subr.bf16.mxu0 0
    %145 = vmatpush1.bf16.msra.mxu0 0
    %146 = vmatprep.subr.bf16.mxu0 0
    %147 = vmatpush1.bf16.msra.mxu0 0
    %148 = vmatprep.subr.bf16.mxu0 0
    %149 = vmatpush1.bf16.msra.mxu0 0
    %150 = vmatprep.subr.bf16.mxu0 0
    %151 = vmatpush1.bf16.msra.mxu0 0
    %152 = vmatprep.subr.bf16.mxu0 0
    %153 = vmatpush1.bf16.msra.mxu0 0
    %154 = vmatprep.subr.bf16.mxu0 0
    %155 = vmatpush1.bf16.msra.mxu0 0
    %156 = vmatprep.subr.bf16.mxu0 0
    %157 = vmatpush1.bf16.msra.mxu0 0
    %158 = vmatprep.subr.bf16.mxu0 0
    %159 = vmatpush1.bf16.msra.mxu0 0
    %160 = vmatprep.subr.bf16.mxu0 0
    %161 = vmatpush1.bf16.msra.mxu0 0
    %162 = vmatprep.subr.bf16.mxu0 0
    %163 = vmatpush1.bf16.msra.mxu0 0
    %164 = vmatprep.subr.bf16.mxu0 0
    %165 = vmatpush1.bf16.msra.mxu0 0
    %166 = vmatprep.subr.bf16.mxu0 0
    %167 = vmatpush1.bf16.msra.mxu0 0
    %168 = vmatprep.mubr.bf16.mxu0 0
    %169 = vmatmul.mubr.bf16.gmra.mrb[0].mxu0 %v134
    %v170 = vpop.f32.mrb[0].mxu0
    %v171 = vadd.f32 %v120, %v170
    %v172 = vpop.f32.mrb[0].mxu0
    %v173 = vpop.f32.mrb[0].mxu0
    %v174 = vadd.f32 %v120, %v173
    %v175 = vpop.f32.mrb[0].mxu0
    %176 = vdwg.mxu0
    %v177 = vmin.f32 %v171, 40.0
    %v178 = vmin.f32 %v174, 40.0
    %v179 = vpack.c.bf16 %v178, %v177
    %v181 = vmul.bf16 %v179, 1069105081
    %v182 = vpow.bf16.pop %v181
    %v183 = vunpack.c.l.bf16 %v182
    %v184 = vunpack.c.h.bf16 %v182
    %v185 = vadd.f32 %v183, 2.0
    %v186 = vadd.f32 %v184, 2.0
    %v187 = vmul.f32 %v183, %v185
    %v188 = vmul.f32 %v184, %v186
    %v189 = vmul.f32 %v171, %v187
    %v190 = vmul.f32 %v174, %v188
    %v191 = vadd.f32 %v187, 2.0
    %v192 = vadd.f32 %v188, 2.0
    %v193 = vrcp.pop %v191
    %v194 = vrcp.pop %v192
    %v195 = vmul.f32 %v189, %v193
    %v196 = vmul.f32 %v190, %v194
    %vm197 = vcmask 523264
    %v198 = vsel %vm197, %v195, 0.0
    %199 = vadd.xlane.f32.xlu0 %v198
    %v200 = vpop.xlane.xlu0 %199
    %v201 = vsel %vm197, %v196, 0.0
    %202 = vadd.xlane.f32.xlu0 %v201
    %v203 = vpop.xlane.xlu0 %202
    %v204 = vmul.f32 %v195, %v195
    %v205 = vmul.f32 %v196, %v196
    %v206 = vsel %vm197, %v204, 0.0
    %207 = vadd.xlane.f32.xlu0 %v206
    %v208 = vpop.xlane.xlu0 %207
    %v209 = vsel %vm197, %v205, 0.0
    %210 = vadd.xlane.f32.xlu0 %v209
    %v211 = vpop.xlane.xlu0 %210
    %v212 = vmul.f32 %v200, 0.015625
    %v213 = vmul.f32 %v203, 0.015625
    %v214 = vmul.f32 %v200, %v212
    %v215 = vmul.f32 %v203, %v213
    %v216 = vsub.f32 %v208, %v214
    %v217 = vsub.f32 %v211, %v215
    %v218 = vmax.f32 %v216, 0.0
    %v219 = vmax.f32 %v217, 0.0
    %v220 = vmul.f32 %v218, 0.015873017
    %v221 = vmul.f32 %v219, 0.015873017
    %v222 = vrsqrt.pop %v220
    %v223 = vmul.f32 %v220, %v222
    %vm224 = vcmp.eq.f32.partialorder %v220, inf
    %v225 = vsel %vm224, %v220, %v223
    %vm226 = vcmp.eq.f32.partialorder %v220, 0.0
    %v227 = vand.u32 %v220, 2147483648
    %v228 = vsel %vm226, %v227, %v225
    %v229 = vrsqrt.pop %v221
    %v230 = vmul.f32 %v221, %v229
    %vm231 = vcmp.eq.f32.partialorder %v221, inf
    %v232 = vsel %vm231, %v221, %v230
    %vm233 = vcmp.eq.f32.partialorder %v221, 0.0
    %v234 = vand.u32 %v221, 2147483648
    %v235 = vsel %vm233, %v234, %v232
    %v236 = vadd.f32 %v228, 1e-06
    %v237 = vadd.f32 %v235, 1e-06
    %v238 = vrcp.pop %v236
    %v239 = vmul.f32 1.0, %v238
    %v240 = vrcp.pop %v237
    %v241 = vmul.f32 1.0, %v240
    %v242 = vsub.f32 %v195, %v212
    %v243 = vsub.f32 %v196, %v213
    %v244 = vmul.f32 %v242, %v239
    %v245 = vmul.f32 %v243, %v241
    %v246 = vpack.c.bf16 %v245, %v244
    %v247 = vld [vmem:[#allocation7] sm:$0xf]
    %v248 = vld [vmem:[#allocation7 + $0x4] sm:$0xf]
    %v249 = vld [vmem:[#allocation7 + $0x8] sm:$0xf]
    %v250 = vld [vmem:[#allocation7 + $0xc] sm:$0xf]
    %v251 = vld [vmem:[#allocation7 + $0x10] sm:$0xf]
    %v252 = vld [vmem:[#allocation7 + $0x14] sm:$0xf]
    %v253 = vld [vmem:[#allocation7 + $0x18] sm:$0xf]
    %v254 = vld [vmem:[#allocation7 + $0x1c] sm:$0xf]
    %v255 = vlaneseq
    %v256 = vshrl.u32 %v255, 7
    %v257 = vsub.s32 1, %v256
    %v258 = vrot.slane %v62, %v257
    %v267 = vunpack.c.l.b16 %v247
    %v268 = vunpack.c.l.b16 %v248
    %v269 = vunpack.c.l.b16 %v249
    %v270 = vunpack.c.l.b16 %v250
    %v271 = vunpack.c.l.b16 %v251
    %v272 = vunpack.c.l.b16 %v252
    %v273 = vunpack.c.l.b16 %v253
    %v274 = vunpack.c.l.b16 %v254
    %v275 = vpack.c.b16 %v268, %v267
    %v276 = vpack.c.b16 %v270, %v269
    %v277 = vpack.c.b16 %v272, %v271
    %v278 = vpack.c.b16 %v274, %v273
    %v284 = vsel %vm197, %v246, 0
    %286 = vmatprep.subr.bf16.mxu0 0
    %287 = vmatpush1.bf16.msra.mxu0 %v275
    %288 = vmatprep.subr.bf16.mxu0 0
    %289 = vmatpush1.bf16.msra.mxu0 %v276
    %290 = vmatprep.subr.bf16.mxu0 0
    %291 = vmatpush1.bf16.msra.mxu0 %v277
    %292 = vmatprep.subr.bf16.mxu0 0
    %293 = vmatpush1.bf16.msra.mxu0 %v278
    %294 = vmatprep.subr.bf16.mxu0 0
    %295 = vmatpush1.bf16.msra.mxu0 0
    %296 = vmatprep.subr.bf16.mxu0 0
    %297 = vmatpush1.bf16.msra.mxu0 0
    %298 = vmatprep.subr.bf16.mxu0 0
    %299 = vmatpush1.bf16.msra.mxu0 0
    %300 = vmatprep.subr.bf16.mxu0 0
    %301 = vmatpush1.bf16.msra.mxu0 0
    %302 = vmatprep.subr.bf16.mxu0 0
    %303 = vmatpush1.bf16.msra.mxu0 0
    %304 = vmatprep.subr.bf16.mxu0 0
    %305 = vmatpush1.bf16.msra.mxu0 0
    %306 = vmatprep.subr.bf16.mxu0 0
    %307 = vmatpush1.bf16.msra.mxu0 0
    %308 = vmatprep.subr.bf16.mxu0 0
    %309 = vmatpush1.bf16.msra.mxu0 0
    %310 = vmatprep.subr.bf16.mxu0 0
    %311 = vmatpush1.bf16.msra.mxu0 0
    %312 = vmatprep.subr.bf16.mxu0 0
    %313 = vmatpush1.bf16.msra.mxu0 0
    %314 = vmatprep.subr.bf16.mxu0 0
    %315 = vmatpush1.bf16.msra.mxu0 0
    %316 = vmatprep.subr.bf16.mxu0 0
    %317 = vmatpush1.bf16.msra.mxu0 0
    %318 = vmatprep.mubr.bf16.mxu0 0
    %319 = vmatmul.mubr.bf16.gmra.mrb[0].mxu0 %v284
    %v320 = vpop.f32.mrb[0].mxu0
    %v321 = vadd.f32 %v258, %v320
    %v322 = vpop.f32.mrb[0].mxu0
    %v323 = vpop.f32.mrb[0].mxu0
    %v324 = vadd.f32 %v258, %v323
    %v325 = vpop.f32.mrb[0].mxu0
    %326 = vdwg.mxu0
    %v327 = vmin.f32 %v321, 40.0
    %v328 = vmin.f32 %v324, 40.0
    %v329 = vpack.c.bf16 %v328, %v327
    %v331 = vmul.bf16 %v329, 1069105081
    %v332 = vpow.bf16.pop %v331
    %v333 = vunpack.c.l.bf16 %v332
    %v334 = vunpack.c.h.bf16 %v332
    %v335 = vadd.f32 %v333, 2.0
    %v336 = vadd.f32 %v334, 2.0
    %v337 = vmul.f32 %v333, %v335
    %v338 = vmul.f32 %v334, %v336
    %v339 = vmul.f32 %v321, %v337
    %v340 = vmul.f32 %v324, %v338
    %v341 = vadd.f32 %v337, 2.0
    %v342 = vadd.f32 %v338, 2.0
    %v343 = vrcp.pop %v341
    %v344 = vrcp.pop %v342
    %v345 = vmul.f32 %v339, %v343
    %v346 = vmul.f32 %v340, %v344
    %v347 = vsel %vm197, %v345, 0.0
    %348 = vadd.xlane.f32.xlu0 %v347
    %v349 = vpop.xlane.xlu0 %348
    %v350 = vsel %vm197, %v346, 0.0
    %351 = vadd.xlane.f32.xlu0 %v350
    %v352 = vpop.xlane.xlu0 %351
    %v353 = vmul.f32 %v345, %v345
    %v354 = vmul.f32 %v346, %v346
    %v355 = vsel %vm197, %v353, 0.0
    %356 = vadd.xlane.f32.xlu0 %v355
    %v357 = vpop.xlane.xlu0 %356
    %v358 = vsel %vm197, %v354, 0.0
    %359 = vadd.xlane.f32.xlu0 %v358
    %v360 = vpop.xlane.xlu0 %359
    %v361 = vmul.f32 %v349, 0.015625
    %v362 = vmul.f32 %v352, 0.015625
    %v363 = vmul.f32 %v349, %v361
    %v364 = vmul.f32 %v352, %v362
    %v365 = vsub.f32 %v357, %v363
    %v366 = vsub.f32 %v360, %v364
    %v367 = vmax.f32 %v365, 0.0
    %v368 = vmax.f32 %v366, 0.0
    %v369 = vmul.f32 %v367, 0.015873017
    %v370 = vmul.f32 %v368, 0.015873017
    %v371 = vrsqrt.pop %v369
    %v372 = vmul.f32 %v369, %v371
    %vm373 = vcmp.eq.f32.partialorder %v369, inf
    %v374 = vsel %vm373, %v369, %v372
    %vm375 = vcmp.eq.f32.partialorder %v369, 0.0
    %v376 = vand.u32 %v369, 2147483648
    %v377 = vsel %vm375, %v376, %v374
    %v378 = vrsqrt.pop %v370
    %v379 = vmul.f32 %v370, %v378
    %vm380 = vcmp.eq.f32.partialorder %v370, inf
    %v381 = vsel %vm380, %v370, %v379
    %vm382 = vcmp.eq.f32.partialorder %v370, 0.0
    %v383 = vand.u32 %v370, 2147483648
    %v384 = vsel %vm382, %v383, %v381
    %v385 = vadd.f32 %v377, 1e-06
    %v386 = vadd.f32 %v384, 1e-06
    %v387 = vrcp.pop %v385
    %v388 = vmul.f32 1.0, %v387
    %v389 = vrcp.pop %v386
    %v390 = vmul.f32 1.0, %v389
    %v391 = vsub.f32 %v345, %v361
    %v392 = vsub.f32 %v346, %v362
    %v393 = vmul.f32 %v391, %v388
    %v394 = vmul.f32 %v392, %v390
    %v395 = vlaneseq
    %v396 = vshrl.u32 %v395, 7
    %v397 = vsub.s32 2, %v396
    %v398 = vrot.slane %v62, %v397
    %v399 = vmul.f32 %v398, %v393
    %v400 = vmul.f32 %v398, %v394
    %v401 = vlaneseq
    %v402 = vshrl.u32 %v401, 7
    %v403 = vsub.s32 3, %v402
    %v404 = vrot.slane %v62, %v403
    %v405 = vadd.f32 %v399, %v404
    %v406 = vadd.f32 %v400, %v404
    %407 = vst.msk [vmem:[#allocation8] sm:$0xff] %vm197, %v405
    %408 = vst.msk [vmem:[#allocation8 + $0x8] sm:$0xff] %vm197, %v406
    // Predicated region
    $region30: #{tpu_custom_call.1} parent=1 // pred_check
      _
    $region31: #{tpu_custom_call.1} parent=1 // pred_check_branch
      %410 = sbr.rel (0) target = $region33
    $region32: #{tpu_custom_call.1} parent=1 // pred_region
      %s412 = ssub.s32 256, 256
      %413 = vsyncadd [#allocation4], %s412
      %s414 = sshll.u32 [#allocation8], 4
      %s415 = int_to_ptr.vmem [resolvable:$true] %s414
      %420 = dma.vmem_to_hbm [thread:$0]  %s415, 256, %s4, [#allocation4], 128, 128, 8
    $region33: #{tpu_custom_call.1} parent=1 // pred_fallthru
      _
    // Predicated region
    $region34: #{tpu_custom_call.1} parent=1 // pred_check
      _
    $region35: #{tpu_custom_call.1} parent=1 // pred_check_branch
      %422 = sbr.rel (0) target = $region37
    $region36: #{tpu_custom_call.1} parent=1 // pred_region
      %423 = dma.done [#allocation4], 256
    $region37: #{tpu_custom_call.1} parent=1 // pred_fallthru
      _
    %424 = vsyncpa [#allocation3], 1
    %425 = vsyncpa [#allocation6], 1
    %426 = vsyncpa [#allocation4], 1

</llo_original>
